<compile_context>
chip_gen: v5e
topology: v5e:2x2
jax: 0.10.0
libtpu: 0.0.40
codegen_flags: <defaults>
</compile_context>

<pallas_src>
import jax
import jax.numpy as jnp
from jax.experimental import pallas as pl
from jax.experimental.pallas import tpu as pltpu


def tcm_kernel(x_ref, halo_ref, wcat_ref, bcat_ref, o_ref):
    x = x_ref[...]                        # [TN, D]   current row tile
    halo = halo_ref[...]                  # [2, D]    row before / row after tile
    wcat = wcat_ref[...]                  # [D, 4D] = [w0 | w1 | w2 | wg]
    tn, d = x.shape

    # Single fused MXU matmul for the three conv taps + gate projection.
    y = jnp.dot(x, wcat, preferred_element_type=jnp.float32)       # [TN, 4D]
    hy = jnp.dot(halo, wcat, preferred_element_type=jnp.float32)   # [2, 4D]

    y0 = y[:, 0:d]            # x[n] @ w0   (needed at row n+1)
    y1 = y[:, d:2 * d]        # x[n] @ w1
    y2 = y[:, 2 * d:3 * d]    # x[n] @ w2   (needed at row n-1)
    yg = y[:, 3 * d:4 * d]    # x[n] @ wg   (gate pre-activation)

    # Shift the matmul OUTPUT instead of the input:
    #   context[n] = (x[n-1] @ w0) + (x[n] @ w1) + (x[n+1] @ w2) + bc
    # Boundary rows come from the 2-row halo (zeros at the global stream ends).
    row = jax.lax.broadcasted_iota(jnp.int32, (tn, d), 0)
    y0_prev = jnp.where(row == 0, hy[0:1, 0:d],
                        pltpu.roll(y0, shift=1, axis=0))
    y2_next = jnp.where(row == tn - 1, hy[1:2, 2 * d:3 * d],
                        pltpu.roll(y2, shift=tn - 1, axis=0))

    bcat = bcat_ref[...]                  # [1, 2D] f32: [conv_b | gate_b]
    context = y0_prev + y1 + y2_next + bcat[:, 0:d]
    gate = jax.nn.sigmoid(yg + bcat[:, d:2 * d])

    o_ref[...] = (x.astype(jnp.float32) + context * gate).astype(o_ref.dtype)


def _choose_tile_n(total_rows, d, itemsize):
    # Fit under every generation's *default* scoped-VMEM limit (16 MiB v5e,
    # 32 MiB v6e/v7x) without touching vmem_limit_bytes:
    #   streams  : (x-in + out) x double-buffer = 4 * TN * D * itemsize
    #   weights  : Wcat [D, 4D] double-buffered  (subtracted from the budget)
    budget = 12 * 1024 * 1024
    fixed = 2 * (4 * d * d * itemsize) + 64 * 1024        # Wcat x2 + bcat/halo slack
    avail = max(1 << 20, budget - fixed)
    tn = avail // max(1, 4 * d * itemsize)
    tn = max(8, min(2048, (tn // 8) * 8))
    rows_ceil = ((total_rows + 7) // 8) * 8
    return min(tn, rows_ceil)


def tumor_context_module(x, conv_w, conv_b, gate_w, gate_b):
    """x:[B,N,D], conv_w:[D_out,D_in,3], conv_b:[D], gate_w:[D_out,D_in], gate_b:[D]."""
    B, N, D = x.shape
    dt = x.dtype

    # Fused weight [D_in, 4*D_out]: conv taps (n-1, n, n+1), then gate weight.
    wcat = jnp.concatenate(
        [conv_w[:, :, 0].T, conv_w[:, :, 1].T, conv_w[:, :, 2].T, gate_w.T],
        axis=1,
    ).astype(dt)                                                   # [D, 4D]
    bcat = jnp.concatenate([conv_b, gate_b]).reshape(1, 2 * D).astype(jnp.float32)

    # Flatten (batch, sequence) into one row stream.  A >=1 zero separator row
    # between batches makes cross-batch conv taps read zeros, which reproduces
    # nn.Conv1d(padding=1) zero padding at both ends of every sequence.
    stride = N + 1 if B > 1 else N
    itemsize = jnp.dtype(dt).itemsize
    L = B * stride
    TN = _choose_tile_n(L, D, itemsize)
    T = -(-L // TN)
    L_pad = T * TN

    x_s = jnp.pad(x, ((0, 0), (0, stride - N), (0, 0))) if stride != N else x
    x_flat = x_s.reshape(L, D)
    if L_pad != L:
        x_flat = jnp.pad(x_flat, ((0, L_pad - L), (0, 0)))         # [L_pad, D]

    # Per-tile ±1-row halo (zeros at the global ends of the flattened stream).
    xp = jnp.pad(x_flat, ((1, 1), (0, 0)))                         # [L_pad+2, D]
    halo = jnp.stack(
        [xp[0:L_pad:TN, :],        # flat row t*TN - 1   -> prev-row tap for tile row 0
         xp[TN + 1::TN, :]],       # flat row (t+1)*TN   -> next-row tap for last tile row
        axis=1,
    )                                                              # [T, 2, D]

    out_flat = pl.pallas_call(
        tcm_kernel,
        out_shape=jax.ShapeDtypeStruct((L_pad, D), dt),
        grid_spec=pltpu.PrefetchScalarGridSpec(
            num_scalar_prefetch=0,
            grid=(T,),
            in_specs=[
                pl.BlockSpec((TN, D), lambda t: (t, 0)),           # x row tile
                pl.BlockSpec((None, 2, D), lambda t: (t, 0, 0)),   # halo rows
                pl.BlockSpec((D, 4 * D), lambda t: (0, 0)),        # Wcat (resident)
                pl.BlockSpec((1, 2 * D), lambda t: (0, 0)),        # Bcat (resident)
            ],
            out_specs=pl.BlockSpec((TN, D), lambda t: (t, 0)),
        ),
        compiler_params=pltpu.CompilerParams(
            dimension_semantics=("parallel",),
        ),
    )(x_flat, halo, wcat, bcat)

    out = out_flat[:L].reshape(B, stride, D)
    return out[:, :N, :] if stride != N else out


def reference(x, conv_w, conv_b, gate_w, gate_b):
    """Plain-JAX reference matching the PyTorch forward."""
    xp = jnp.pad(x, ((0, 0), (1, 1), (0, 0)))
    ctx = (
        jnp.einsum("bni,oi->bno", xp[:, :-2], conv_w[:, :, 0])
        + jnp.einsum("bni,oi->bno", xp[:, 1:-1], conv_w[:, :, 1])
        + jnp.einsum("bni,oi->bno", xp[:, 2:], conv_w[:, :, 2])
        + conv_b
    )
    gate = jax.nn.sigmoid(jnp.einsum("bni,oi->bno", x, gate_w) + gate_b)
    return x + ctx * gate


if __name__ == "__main__":
    B, N, D = 2, 8, 32   # batch=2, seq=8, embed_dim=32

    key = jax.random.PRNGKey(0)
    kx, k1, k2, k3, k4 = jax.random.split(key, 5)

    x = jax.random.normal(kx, (B, N, D), dtype=jnp.float32)

    # Deterministic synthetic parameters (shapes match nn.Conv1d / nn.Linear).
    conv_w = jax.random.normal(k1, (D, D, 3), dtype=jnp.float32) * 0.05
    conv_b = jax.random.normal(k2, (D,), dtype=jnp.float32) * 0.05
    gate_w = jax.random.normal(k3, (D, D), dtype=jnp.float32) * 0.05
    gate_b = jax.random.normal(k4, (D,), dtype=jnp.float32) * 0.05

    out = tumor_context_module(x, conv_w, conv_b, gate_w, gate_b)
    out = jax.block_until_ready(out)

    ref = reference(x, conv_w, conv_b, gate_w, gate_b)
    assert out.shape == (B, N, D)
    assert jnp.allclose(out, ref, atol=1e-5, rtol=1e-5), "mismatch vs reference"

    print("KERNEL_OK")
</pallas_src>

<mosaic_0001>
module attributes {stable_mosaic.version = 11 : i64} {
  func.func @tcm_kernel(%arg0: i32, %arg1: memref<24x32xf32, #tpu.memory_space<vmem>>, %arg2: memref<1x2x32xf32, #tpu.memory_space<vmem>>, %arg3: memref<32x128xf32, #tpu.memory_space<vmem>>, %arg4: memref<1x64xf32, #tpu.memory_space<vmem>>, %arg5: memref<24x32xf32, #tpu.memory_space<vmem>>) attributes {dimension_semantics = [#tpu.dimension_semantics<parallel>], iteration_bounds = array<i64: 1>, scalar_prefetch = 0 : i64, scratch_operands = 0 : i64, tpu.core_type = #tpu.core_type<tc>, window_params = [{transform_indices = @transform_0, window_bounds = array<i64: 24, 32>}, {transform_indices = @transform_1, window_bounds = array<i64: 1, 2, 32>}, {pipeline_mode = #tpu.pipeline_mode<synchronous>, transform_indices = @transform_2, window_bounds = array<i64: 32, 128>}, {pipeline_mode = #tpu.pipeline_mode<synchronous>, transform_indices = @transform_3, window_bounds = array<i64: 1, 64>}, {transform_indices = @transform_4, window_bounds = array<i64: 24, 32>}]} {
    %c0 = arith.constant 0 : index
    %c0_0 = arith.constant 0 : index
    %0 = vector.load %arg1[%c0, %c0_0] : memref<24x32xf32, #tpu.memory_space<vmem>>, vector<24x32xf32>
    %c0_1 = arith.constant 0 : index
    %c0_2 = arith.constant 0 : index
    %c0_3 = arith.constant 0 : index
    %1 = vector.load %arg2[%c0_1, %c0_2, %c0_3] : memref<1x2x32xf32, #tpu.memory_space<vmem>>, vector<1x2x32xf32>
    %2 = vector.shape_cast %1 : vector<1x2x32xf32> to vector<2x32xf32>
    %c0_4 = arith.constant 0 : index
    %c0_5 = arith.constant 0 : index
    %3 = vector.load %arg3[%c0_4, %c0_5] : memref<32x128xf32, #tpu.memory_space<vmem>>, vector<32x128xf32>
    %cst = arith.constant dense<0.000000e+00> : vector<24x128xf32>
    %4 = tpu.matmul %0, %3, %cst {dimension_numbers = #tpu.dot_dimension_numbers<[1], [0], [0], [1], [0, 0, 1, 1], [], []>} : vector<24x32xf32>, vector<32x128xf32>, vector<24x128xf32> -> vector<24x128xf32>
    %cst_6 = arith.constant dense<0.000000e+00> : vector<2x128xf32>
    %5 = tpu.matmul %2, %3, %cst_6 {dimension_numbers = #tpu.dot_dimension_numbers<[1], [0], [0], [1], [0, 0, 1, 1], [], []>} : vector<2x32xf32>, vector<32x128xf32>, vector<2x128xf32> -> vector<2x128xf32>
    %6 = vector.extract_strided_slice %4 {offsets = [0, 0], sizes = [24, 32], strides = [1, 1]} : vector<24x128xf32> to vector<24x32xf32>
    %7 = vector.extract_strided_slice %4 {offsets = [0, 32], sizes = [24, 32], strides = [1, 1]} : vector<24x128xf32> to vector<24x32xf32>
    %8 = vector.extract_strided_slice %4 {offsets = [0, 64], sizes = [24, 32], strides = [1, 1]} : vector<24x128xf32> to vector<24x32xf32>
    %9 = vector.extract_strided_slice %4 {offsets = [0, 96], sizes = [24, 32], strides = [1, 1]} : vector<24x128xf32> to vector<24x32xf32>
    %10 = tpu.iota {dimensions = array<i32: 0>} : vector<24x32xi32>
    %c0_i32 = arith.constant 0 : i32
    %11 = vector.broadcast %c0_i32 : i32 to vector<24x32xi32>
    %12 = arith.cmpi eq, %10, %11 : vector<24x32xi32>
    %13 = vector.extract_strided_slice %5 {offsets = [0, 0], sizes = [1, 32], strides = [1, 1]} : vector<2x128xf32> to vector<1x32xf32>
    %c1_i32 = arith.constant 1 : i32
    %14 = tpu.dynamic_rotate %6 by %c1_i32 dim 0 : vector<24x32xf32>, i32 -> vector<24x32xf32>
    %15 = vector.shape_cast %13 : vector<1x32xf32> to vector<1x32xf32>
    %16 = vector.broadcast %15 : vector<1x32xf32> to vector<24x32xf32>
    %17 = arith.select %12, %16, %14 : vector<24x32xi1>, vector<24x32xf32>
    %c23_i32 = arith.constant 23 : i32
    %18 = vector.broadcast %c23_i32 : i32 to vector<24x32xi32>
    %19 = arith.cmpi eq, %10, %18 : vector<24x32xi32>
    %20 = vector.extract_strided_slice %5 {offsets = [1, 64], sizes = [1, 32], strides = [1, 1]} : vector<2x128xf32> to vector<1x32xf32>
    %c23_i32_7 = arith.constant 23 : i32
    %21 = tpu.dynamic_rotate %8 by %c23_i32_7 dim 0 : vector<24x32xf32>, i32 -> vector<24x32xf32>
    %22 = vector.shape_cast %20 : vector<1x32xf32> to vector<1x32xf32>
    %23 = vector.broadcast %22 : vector<1x32xf32> to vector<24x32xf32>
    %24 = arith.select %19, %23, %21 : vector<24x32xi1>, vector<24x32xf32>
    %c0_8 = arith.constant 0 : index
    %c0_9 = arith.constant 0 : index
    %25 = vector.load %arg4[%c0_8, %c0_9] : memref<1x64xf32, #tpu.memory_space<vmem>>, vector<1x64xf32>
    %26 = arith.addf %17, %7 : vector<24x32xf32>
    %27 = arith.addf %26, %24 : vector<24x32xf32>
    %28 = vector.extract_strided_slice %25 {offsets = [0, 0], sizes = [1, 32], strides = [1, 1]} : vector<1x64xf32> to vector<1x32xf32>
    %29 = vector.broadcast %28 : vector<1x32xf32> to vector<24x32xf32>
    %30 = arith.addf %27, %29 : vector<24x32xf32>
    %31 = vector.extract_strided_slice %25 {offsets = [0, 32], sizes = [1, 32], strides = [1, 1]} : vector<1x64xf32> to vector<1x32xf32>
    %32 = vector.broadcast %31 : vector<1x32xf32> to vector<24x32xf32>
    %33 = arith.addf %9, %32 : vector<24x32xf32>
    %34 = arith.negf %33 : vector<24x32xf32>
    %35 = math.exp %34 : vector<24x32xf32>
    %cst_10 = arith.constant 1.000000e+00 : f32
    %36 = vector.broadcast %cst_10 : f32 to vector<24x32xf32>
    %37 = arith.addf %36, %35 : vector<24x32xf32>
    %38 = arith.divf %36, %37 : vector<24x32xf32>
    %39 = arith.mulf %30, %38 : vector<24x32xf32>
    %40 = arith.addf %0, %39 : vector<24x32xf32>
    %c0_11 = arith.constant 0 : index
    %c0_12 = arith.constant 0 : index
    %41 = vector.load %arg5[%c0_11, %c0_12] : memref<24x32xf32, #tpu.memory_space<vmem>>, vector<24x32xf32>
    tpu.vector_store %arg5[%c0_11, %c0_12], %40 {strides = array<i32>} : memref<24x32xf32, #tpu.memory_space<vmem>>, vector<24x32xf32>,
    return
  }
  func.func @transform_0(%arg0: i32) -> (i32, i32) {
    %c0_i32 = arith.constant 0 : i32
    %c0_i32_0 = arith.constant 0 : i32
    return %arg0, %c0_i32 : i32, i32
  }
  func.func @transform_1(%arg0: i32) -> (i32, i32, i32) {
    %c0_i32 = arith.constant 0 : i32
    %c0_i32_0 = arith.constant 0 : i32
    %c0_i32_1 = arith.constant 0 : i32
    return %arg0, %c0_i32, %c0_i32_0 : i32, i32, i32
  }
  func.func @transform_2(%arg0: i32) -> (i32, i32) {
    %c0_i32 = arith.constant 0 : i32
    %c0_i32_0 = arith.constant 0 : i32
    %c0_i32_1 = arith.constant 0 : i32
    return %c0_i32, %c0_i32_0 : i32, i32
  }
  func.func @transform_3(%arg0: i32) -> (i32, i32) {
    %c0_i32 = arith.constant 0 : i32
    %c0_i32_0 = arith.constant 0 : i32
    %c0_i32_1 = arith.constant 0 : i32
    return %c0_i32, %c0_i32_0 : i32, i32
  }
  func.func @transform_4(%arg0: i32) -> (i32, i32) {
    %c0_i32 = arith.constant 0 : i32
    %c0_i32_0 = arith.constant 0 : i32
    return %arg0, %c0_i32 : i32, i32
  }
}

</mosaic_0001>

<llo_original>
// kernel: tpu_custom_call.1
$region0: #{tpu_custom_call.1}
  #allocation0 [shape = 'u32[]', space=smem, size = 0x4, offset = 0x4, fixed_abs, tag = 'smem constant byte address 0x4 - core index']
  #allocation1 [shape = 'u32[72,128]{1,0:T(1,128)}', space=vmem, size = 0x9000, scoped, tag = 'internal scratch']
  %s0 = inlined_call_operand.hbm [shape: f32[24,32], index: 0, kind: input, shape index: {}]
  %s1 = inlined_call_operand.hbm [shape: f32[1,2,32], index: 1, kind: input, shape index: {}]
  %s2 = inlined_call_operand.hbm [shape: f32[32,128], index: 2, kind: input, shape index: {}]
  %s3 = inlined_call_operand.vmem [shape: f32[1,64], index: 3, kind: input, shape index: {}]
  %s4 = inlined_call_operand.hbm [shape: f32[24,32], index: 4, kind: output, shape index: {}]
  %s5 = sld [smem:[#allocation0]]
  $region38: #{tpu_custom_call.1} parent=0
    _
  %s7 = ssub.s32 1, %s5
  %s8 = scalar_select 0, %s7, %s5
  $region1: #{tpu_custom_call.1} parent=0
    #allocation2 [shape = 'u8[12288]{0}', space=vmem, size = 0x3000, scoped, tag = 'input window, operand 0, single buffered']
    #allocation3 [shape = 's32[1]{0}', space=sflag, size = 0x4, scoped, tag = 'scoped memory for tpu_custom_call.1']
    #allocation4 [shape = 's32[1]{0}', space=sflag, size = 0x4, scoped, tag = 'scoped memory for tpu_custom_call.1']
    #allocation5 [shape = 'u8[1024]{0}', space=vmem, size = 0x400, scoped, tag = 'input window, operand 1, single buffered']
    #allocation6 [shape = 's32[1]{0}', space=sflag, size = 0x4, scoped, tag = 'scoped memory for tpu_custom_call.1']
    #allocation7 [shape = 'u8[16384]{0}', space=vmem, size = 0x4000, scoped, tag = 'input window, operand 2, single buffered']
    #allocation8 [shape = 'u8[12288]{0}', space=vmem, size = 0x3000, scoped, tag = 'output window, operand 0, single buffered']
    %9 = vsyncpa [#allocation3], 0
    %10 = vsyncpa [#allocation6], 0
    %11 = vsyncpa [#allocation4], 0
    // Predicated region
    $region2: #{tpu_custom_call.1} parent=1 // pred_check
      _
    $region3: #{tpu_custom_call.1} parent=1 // pred_check_branch
      %13 = sbr.rel (0) target = $region5
    $region4: #{tpu_custom_call.1} parent=1 // pred_region
      %15 = vsyncadd [#allocation3], 0
      %s16 = sshll.u32 %s0, 4
      %s17 = int_to_ptr.hbm [resolvable:$true] %s16
      %s18 = sshll.u32 [#allocation2], 4
      %s19 = int_to_ptr.vmem [resolvable:$true] %s18
      %24 = dma.hbm_to_vmem [thread:$0]  %s17, 384, %s19, [#allocation3], 128, 128, 8
    $region5: #{tpu_custom_call.1} parent=1 // pred_fallthru
      _
    // Predicated region
    $region6: #{tpu_custom_call.1} parent=1 // pred_check
      _
    $region7: #{tpu_custom_call.1} parent=1 // pred_check_branch
      %26 = sbr.rel (0) target = $region9
    $region8: #{tpu_custom_call.1} parent=1 // pred_region
      %28 = vsyncadd [#allocation6], 0
      %s30 = sshll.u32 %s1, 4
      %s31 = int_to_ptr.hbm [resolvable:$true] %s30
      %s32 = sshll.u32 [#allocation5], 4
      %s33 = int_to_ptr.vmem [resolvable:$true] %s32
      %35 = dma.hbm_to_vmem [thread:$0]  %s31, 32, %s33, [#allocation6]
    $region9: #{tpu_custom_call.1} parent=1 // pred_fallthru
      _
    // Predicated region
    $region10: #{tpu_custom_call.1} parent=1 // pred_check
      _
    $region11: #{tpu_custom_call.1} parent=1 // pred_check_branch
      %37 = sbr.rel (0) target = $region13
    $region12: #{tpu_custom_call.1} parent=1 // pred_region
      %39 = vsyncadd [#allocation6], 0
      %s40 = sshll.u32 %s2, 4
      %s41 = int_to_ptr.hbm [resolvable:$true] %s40
      %s42 = sshll.u32 [#allocation7], 4
      %s43 = int_to_ptr.vmem [resolvable:$true] %s42
      %48 = dma.hbm_to_vmem [thread:$0]  %s41, 512, %s43, [#allocation6], 128, 128, 8
    $region13: #{tpu_custom_call.1} parent=1 // pred_fallthru
      _
    // Predicated region
    $region14: #{tpu_custom_call.1} parent=1 // pred_check
      _
    $region15: #{tpu_custom_call.1} parent=1 // pred_check_branch
      %50 = sbr.rel (0) target = $region17
    $region16: #{tpu_custom_call.1} parent=1 // pred_region
      _
    $region17: #{tpu_custom_call.1} parent=1 // pred_fallthru
      _
    // Predicated region
    $region18: #{tpu_custom_call.1} parent=1 // pred_check
      _
    $region19: #{tpu_custom_call.1} parent=1 // pred_check_branch
      %52 = sbr.rel (0) target = $region21
    $region20: #{tpu_custom_call.1} parent=1 // pred_region
      %54 = dma.done [#allocation3], 384
    $region21: #{tpu_custom_call.1} parent=1 // pred_fallthru
      _
    // Predicated region
    $region22: #{tpu_custom_call.1} parent=1 // pred_check
      _
    $region23: #{tpu_custom_call.1} parent=1 // pred_check_branch
      %56 = sbr.rel (0) target = $region25
    $region24: #{tpu_custom_call.1} parent=1 // pred_region
      %58 = dma.done [#allocation6], 32
    $region25: #{tpu_custom_call.1} parent=1 // pred_fallthru
      _
    // Predicated region
    $region26: #{tpu_custom_call.1} parent=1 // pred_check
      _
    $region27: #{tpu_custom_call.1} parent=1 // pred_check_branch
      %60 = sbr.rel (0) target = $region29
    $region28: #{tpu_custom_call.1} parent=1 // pred_region
      %62 = dma.done [#allocation6], 512
    $region29: #{tpu_custom_call.1} parent=1 // pred_fallthru
      _
    %v63 = vld [vmem:[#allocation2] sm:$0xff]
    %v64 = vld [vmem:[#allocation2 + $0x8] sm:$0xff]
    %v65 = vld [vmem:[#allocation2 + $0x10] sm:$0xff]
    %v66 = vld [vmem:[#allocation5] sm:$0x3]
    %v67 = vld [vmem:[#allocation7] sm:$0xff]
    %v68 = vld [vmem:[#allocation7 + $0x8] sm:$0xff]
    %v69 = vld [vmem:[#allocation7 + $0x10] sm:$0xff]
    %v70 = vld [vmem:[#allocation7 + $0x18] sm:$0xff]
    %vm71 = vcmask 261120
    %v73 = vsel %vm71, %v63, 0
    %v76 = vsel %vm71, %v64, 0
    %v79 = vsel %vm71, %v65, 0
    %81 = vmatpush.msra.mxu0 0.0
    %82 = vmatpush.msra.mxu0 0.0
    %83 = vmatpush.msra.mxu0 0.0
    %84 = vmatpush.msra.mxu0 0.0
    %85 = vmatpush.msra.mxu0 0.0
    %86 = vmatpush.msra.mxu0 0.0
    %87 = vmatpush.msra.mxu0 0.0
    %88 = vmatpush.msra.mxu0 0.0
    %89 = vmatpush.msra.mxu0 0.0
    %90 = vmatpush.msra.mxu0 0.0
    %91 = vmatpush.msra.mxu0 0.0
    %92 = vmatpush.msra.mxu0 0.0
    %93 = vmatpush.msra.mxu0 %v70
    %94 = vmatpush.msra.mxu0 %v69
    %95 = vmatpush.msra.mxu0 %v68
    %96 = vmatpush.msra.mxu0 %v67
    %97 = vmatmul.f32.gmra.mxu0 %v73
    %v98 = vpop.f32.mrf.mxu0
    %v99 = vadd.f32 0.0, %v98
    %100 = vmatmul.f32.gmra.mxu0 %v76
    %v101 = vpop.f32.mrf.mxu0
    %v102 = vadd.f32 0.0, %v101
    %103 = vmatmul.f32.gmra.mxu0 %v79
    %v104 = vpop.f32.mrf.mxu0
    %v105 = vadd.f32 0.0, %v104
    %106 = vdwg.mxu0
    %v108 = vsel %vm71, %v66, 0
    %110 = vmatpush.msra.mxu0 0.0
    %111 = vmatpush.msra.mxu0 0.0
    %112 = vmatpush.msra.mxu0 0.0
    %113 = vmatpush.msra.mxu0 0.0
    %114 = vmatpush.msra.mxu0 0.0
    %115 = vmatpush.msra.mxu0 0.0
    %116 = vmatpush.msra.mxu0 0.0
    %117 = vmatpush.msra.mxu0 0.0
    %118 = vmatpush.msra.mxu0 0.0
    %119 = vmatpush.msra.mxu0 0.0
    %120 = vmatpush.msra.mxu0 0.0
    %121 = vmatpush.msra.mxu0 0.0
    %122 = vmatpush.msra.mxu0 %v70
    %123 = vmatpush.msra.mxu0 %v69
    %124 = vmatpush.msra.mxu0 %v68
    %125 = vmatpush.msra.mxu0 %v67
    %126 = vmatmul.f32.gmra.mxu0 %v108
    %v127 = vpop.f32.mrf.mxu0
    %v128 = vadd.f32 0.0, %v127
    %129 = vdwg.mxu0
    %v130 = vlaneseq
    %v131 = vshrl.u32 %v130, 7
    %v132 = vadd.s32 %v131, 8
    %v133 = vadd.s32 %v131, 16
    %vm134 = vcmp.eq.s32.totalorder %v131, 0
    %vm135 = vcmp.eq.s32.totalorder %v132, 0
    %vm136 = vcmp.eq.s32.totalorder %v133, 0
    %v137 = vrot.slane %v99, 7
    %v138 = vrot.slane %v102, 7
    %v139 = vrot.slane %v105, 7
    %vm140 = vcmp.lt.s32.totalorder %v131, 1
    %v141 = vsel %vm140, %v138, %v139
    %v142 = vsel %vm140, %v137, %v138
    %v143 = vsel %vm140, %v139, %v137
    %v144 = vperm.slane %v128, 0
    %v145 = vsel %vm134, %v144, %v143
    %v146 = vsel %vm135, %v144, %v142
    %v147 = vsel %vm136, %v144, %v141
    %vm148 = vcmp.eq.s32.totalorder %v131, 23
    %vm149 = vcmp.eq.s32.totalorder %v132, 23
    %vm150 = vcmp.eq.s32.totalorder %v133, 23
    %154 = vrot.lane.b32.xlu0 %v99, 64
    %v155 = vpop.permute.xlu0 %154
    %156 = vrot.lane.b32.xlu0 %v102, 64
    %v157 = vpop.permute.xlu0 %156
    %158 = vrot.lane.b32.xlu0 %v105, 64
    %v159 = vpop.permute.xlu0 %158
    %v163 = vrot.slane %v155, 1
    %v164 = vrot.slane %v157, 1
    %v165 = vrot.slane %v159, 1
    %vm166 = vcmp.lt.s32.totalorder %v131, 7
    %v167 = vsel %vm166, %v164, %v165
    %v168 = vsel %vm166, %v163, %v164
    %v169 = vsel %vm166, %v165, %v163
    %v170 = vperm.slane %v128, 1
    %174 = vrot.lane.b32.xlu0 %v168, 64
    %v175 = vpop.permute.xlu0 %174
    %176 = vrot.lane.b32.xlu0 %v167, 64
    %v177 = vpop.permute.xlu0 %176
    %178 = vrot.lane.b32.xlu0 %v169, 64
    %v179 = vpop.permute.xlu0 %178
    %v183 = vsel %vm148, %v170, %v175
    %v184 = vsel %vm149, %v170, %v177
    %v185 = vsel %vm150, %v170, %v179
    %v186 = vld [vmem:[%s3] sm:$0x1]
    %187 = vrot.lane.b32.xlu0 %v99, 96
    %v188 = vpop.permute.xlu0 %187
    %189 = vrot.lane.b32.xlu0 %v102, 96
    %v190 = vpop.permute.xlu0 %189
    %191 = vrot.lane.b32.xlu0 %v105, 96
    %v192 = vpop.permute.xlu0 %191
    %v196 = vadd.f32 %v145, %v188
    %v197 = vadd.f32 %v146, %v190
    %v198 = vadd.f32 %v147, %v192
    %202 = vrot.lane.b32.xlu0 %v183, 64
    %v203 = vpop.permute.xlu0 %202
    %204 = vrot.lane.b32.xlu0 %v184, 64
    %v205 = vpop.permute.xlu0 %204
    %206 = vrot.lane.b32.xlu0 %v185, 64
    %v207 = vpop.permute.xlu0 %206
    %v211 = vadd.f32 %v196, %v203
    %v212 = vadd.f32 %v197, %v205
    %v213 = vadd.f32 %v198, %v207
    %v215 = vperm.slane %v186, 0
    %v217 = vadd.f32 %v211, %v215
    %v218 = vadd.f32 %v212, %v215
    %v219 = vadd.f32 %v213, %v215
    %220 = vrot.lane.b32.xlu0 %v215, 64
    %v221 = vpop.permute.xlu0 %220
    %v223 = vadd.f32 %v99, %v221
    %v224 = vadd.f32 %v102, %v221
    %v225 = vadd.f32 %v105, %v221
    %v226 = vxor.u32 %v223, 2147483648
    %v227 = vxor.u32 %v224, 2147483648
    %v228 = vxor.u32 %v225, 2147483648
    %v229 = vmul.f32 %v226, 1.442695
    %v230 = vpow.pop %v229
    %v231 = vmul.f32 %v227, 1.442695
    %v232 = vpow.pop %v231
    %v233 = vmul.f32 %v228, 1.442695
    %v234 = vpow.pop %v233
    %v235 = vadd.f32 %v230, 1.0
    %v236 = vadd.f32 %v232, 1.0
    %v237 = vadd.f32 %v234, 1.0
    %v238 = vrcp.pop %v235
    %v239 = vmul.f32 %v235, %v238
    %v240 = vsub.f32 1.0, %v239
    %v241 = vmul.f32 %v238, %v240
    %v242 = vadd.f32 %v238, %v241
    %vm243 = vweird.f32 %v235
    %vm244 = vweird.f32 %v238
    %vm245 = vmor %vm243, %vm244
    %v246 = vsel %vm245, %v238, %v242
    %v247 = vand.u32 2147483647, %v235
    %vm248 = vcmp.eq.f32.partialorder %v247, 8.507059e+37
    %v249 = vand.u32 %v235, 2147483648
    %v250 = vor.u32 1.1754944e-38, %v249
    %v251 = vsel %vm248, %v250, %v246
    %v252 = vmul.f32 1.0, %v251
    %v253 = vrcp.pop %v236
    %v254 = vmul.f32 %v236, %v253
    %v255 = vsub.f32 1.0, %v254
    %v256 = vmul.f32 %v253, %v255
    %v257 = vadd.f32 %v253, %v256
    %vm258 = vweird.f32 %v236
    %vm259 = vweird.f32 %v253
    %vm260 = vmor %vm258, %vm259
    %v261 = vsel %vm260, %v253, %v257
    %v262 = vand.u32 2147483647, %v236
    %vm263 = vcmp.eq.f32.partialorder %v262, 8.507059e+37
    %v264 = vand.u32 %v236, 2147483648
    %v265 = vor.u32 1.1754944e-38, %v264
    %v266 = vsel %vm263, %v265, %v261
    %v267 = vmul.f32 1.0, %v266
    %v268 = vrcp.pop %v237
    %v269 = vmul.f32 %v237, %v268
    %v270 = vsub.f32 1.0, %v269
    %v271 = vmul.f32 %v268, %v270
    %v272 = vadd.f32 %v268, %v271
    %vm273 = vweird.f32 %v237
    %vm274 = vweird.f32 %v268
    %vm275 = vmor %vm273, %vm274
    %v276 = vsel %vm275, %v268, %v272
    %v277 = vand.u32 2147483647, %v237
    %vm278 = vcmp.eq.f32.partialorder %v277, 8.507059e+37
    %v279 = vand.u32 %v237, 2147483648
    %v280 = vor.u32 1.1754944e-38, %v279
    %v281 = vsel %vm278, %v280, %v276
    %v282 = vmul.f32 1.0, %v281
    %286 = vrot.lane.b32.xlu0 %v252, 32
    %v287 = vpop.permute.xlu0 %286
    %288 = vrot.lane.b32.xlu0 %v267, 32
    %v289 = vpop.permute.xlu0 %288
    %290 = vrot.lane.b32.xlu0 %v282, 32
    %v291 = vpop.permute.xlu0 %290
    %v295 = vmul.f32 %v217, %v287
    %v296 = vmul.f32 %v218, %v289
    %v297 = vmul.f32 %v219, %v291
    %v298 = vadd.f32 %v63, %v295
    %v299 = vadd.f32 %v64, %v296
    %v300 = vadd.f32 %v65, %v297
    %301 = vst.msk [vmem:[#allocation8] sm:$0xff] %vm71, %v298
    %302 = vst.msk [vmem:[#allocation8 + $0x8] sm:$0xff] %vm71, %v299
    %303 = vst.msk [vmem:[#allocation8 + $0x10] sm:$0xff] %vm71, %v300
    // Predicated region
    $region30: #{tpu_custom_call.1} parent=1 // pred_check
      _
    $region31: #{tpu_custom_call.1} parent=1 // pred_check_branch
      %305 = sbr.rel (0) target = $region33
    $region32: #{tpu_custom_call.1} parent=1 // pred_region
      %307 = vsyncadd [#allocation4], 0
      %s308 = sshll.u32 [#allocation8], 4
      %s309 = int_to_ptr.vmem [resolvable:$true] %s308
      %s310 = sshll.u32 %s4, 4
      %s311 = int_to_ptr.hbm [resolvable:$true] %s310
      %316 = dma.vmem_to_hbm [thread:$0]  %s309, 384, %s311, [#allocation4], 128, 128, 8
    $region33: #{tpu_custom_call.1} parent=1 // pred_fallthru
      _
    // Predicated region
    $region34: #{tpu_custom_call.1} parent=1 // pred_check
      _
    $region35: #{tpu_custom_call.1} parent=1 // pred_check_branch
      %318 = sbr.rel (0) target = $region37
    $region36: #{tpu_custom_call.1} parent=1 // pred_region
      %320 = dma.done [#allocation4], 384
    $region37: #{tpu_custom_call.1} parent=1 // pred_fallthru
      _
    %321 = vsyncpa [#allocation3], 1
    %322 = vsyncpa [#allocation6], 1
    %323 = vsyncpa [#allocation4], 1

</llo_original>
